<compile_context>
chip_gen: v5e
topology: v5e:2x2
jax: 0.10.0
libtpu: 0.0.40
codegen_flags: <defaults>
</compile_context>

<pallas_src>
import jax
import jax.numpy as jnp
import numpy as np
from jax.experimental import pallas as pl
from jax.experimental.pallas import tpu as pltpu

B = 8                      # batch
HIDDEN = 768               # BERT hidden size (fixed by the module: Linear(768, 128))
PROJ = 128                 # CL_dense output dim
NCLASS = 3                 # cfg.nclass
NUM_CAD = 3                # idx=3 CAD augmentations
NSTACK = 2 + NUM_CAD       # origin, masked, cad0..2 stacked along rows -> 5B rows
LANE_PAD = 128             # lane-dense output slab width
COMB = PROJ + LANE_PAD     # fused weight lanes: [W_cl | W_head | att blocks | 0] -> 256
ATT_OFF = PROJ + NCLASS    # first lane of the folded CAD-attention blocks (131)
LOSS_LANE = LANE_PAD - 1   # slab lane that carries the scalar CL loss (always 0 otherwise)
EPS = 1e-8
_HP = jax.lax.Precision.HIGHEST


def debias_kernel(x_ref, wcomb_ref, bias_ref, mask_ref, out_ref):
    bias = bias_ref[...]                                        # [2, 256]

    # One fused MXU matmul: [5B, 768] x [768, 256]
    #   lanes   0:128 -> CL_dense projection of all five CLS blocks (+ b_cl)
    #   lanes 128:131 -> classifier-head logits (origin rows, + b_head)
    #   lanes 131:140 -> folded CAD-attention partials cad_i @ (W_cl @ W_att_i)
    y = (jnp.dot(x_ref[...], wcomb_ref[...],
                 preferred_element_type=jnp.float32)
         + bias[0:1, :])                                        # [5B, 256]

    z = y[:, :PROJ]                                             # [5B, 128]
    z1 = z[0:B, :]                                              # origin projection

    # Batched cross-lane reductions: 2 instead of 9.
    sq = jnp.sum(z * z, axis=-1, keepdims=True)                 # [5B, 1] self dots
    z1_rep = jnp.concatenate([z1] * (NSTACK - 1), axis=0)       # [4B, 128]
    cross = jnp.sum(z1_rep * z[B:, :], axis=-1, keepdims=True)  # [4B, 1] cross dots

    n = jnp.sqrt(sq)                                            # [5B, 1]
    n1 = n[0:B]

    # item1 = mean_b cos(z1, z2)   (collapsed normalize-then-cosine)
    cos12 = cross[0:B] / jnp.maximum(n1 * n[B:2 * B], EPS)      # [B, 1]
    item1 = jnp.sum(cos12, axis=0, keepdims=True) / B           # [1, 1]

    # per-CAD cosines, pre-masked with the precomputed effective CAD mask
    mask = mask_ref[...]                                        # [B, 128] (cols 0:3 valid)
    cad_cols = []
    for i in range(NUM_CAD):
        num = cross[(1 + i) * B:(2 + i) * B]                    # dot(z1, cad_i proj)
        den = jnp.maximum(n1 * n[(2 + i) * B:(3 + i) * B], EPS)
        cad_cols.append((num / den) * mask[:, i:i + 1])         # [B, 1]

    # attention over CAD projections, recovered from the fused-matmul lanes
    att_logits = (y[2 * B:3 * B, ATT_OFF + 0:ATT_OFF + 3]
                  + y[3 * B:4 * B, ATT_OFF + 3:ATT_OFF + 6]
                  + y[4 * B:5 * B, ATT_OFF + 6:ATT_OFF + 9]
                  + bias[1:2, :NUM_CAD])                        # [B, 3]
    att = jax.nn.softmax(att_logits, axis=-1)

    cad_sum = (att[:, 0:1] * cad_cols[0]
               + att[:, 1:2] * cad_cols[1]
               + att[:, 2:3] * cad_cols[2])                     # [B, 1]
    item2 = jnp.sum(cad_sum, axis=0, keepdims=True) / B         # [1, 1]

    # CL hinge loss, delta = 1
    loss = jnp.maximum(1.0 - item1 + item2, 0.0)                # [1, 1]

    # Single lane-dense unmasked store: cols 0:3 -> logits, [0, LOSS_LANE] -> loss.
    slab = y[0:B, PROJ:COMB]                                    # [B, 128]
    row = jax.lax.broadcasted_iota(jnp.int32, (B, LANE_PAD), 0)
    col = jax.lax.broadcasted_iota(jnp.int32, (B, LANE_PAD), 1)
    out_ref[...] = jnp.where((row == 0) & (col == LOSS_LANE), loss, slab)


def init_params(key):
    ks = jax.random.split(key, 6)
    W_cl = jax.random.normal(ks[0], (HIDDEN, PROJ), jnp.float32) * 0.02
    b_cl = jax.random.normal(ks[1], (1, PROJ), jnp.float32) * 0.01
    W_att = jax.random.normal(ks[2], (PROJ * NUM_CAD, NUM_CAD), jnp.float32) * 0.02
    b_att = jax.random.normal(ks[3], (1, NUM_CAD), jnp.float32) * 0.01
    W_head = jax.random.normal(ks[4], (HIDDEN, NCLASS), jnp.float32) * 0.02
    b_head = jax.random.normal(ks[5], (1, NCLASS), jnp.float32) * 0.01
    return (W_cl, b_cl, W_att, b_att, W_head, b_head)


def prepare_kernel_params(params):
    """One-time weight fusion / padding, hoisted out of the per-call path."""
    W_cl, b_cl, W_att, b_att, W_head, b_head = params
    W_comb = jnp.zeros((HIDDEN, COMB), jnp.float32)
    W_comb = W_comb.at[:, :PROJ].set(W_cl)
    W_comb = W_comb.at[:, PROJ:PROJ + NCLASS].set(W_head)
    # folded CAD-attention weights: three [768, 3] blocks W_cl @ W_att_i
    for i in range(NUM_CAD):
        Wi = W_att[i * PROJ:(i + 1) * PROJ, :]                       # [128, 3]
        W_comb = W_comb.at[:, ATT_OFF + i * NUM_CAD:
                              ATT_OFF + (i + 1) * NUM_CAD].set(
            jnp.dot(W_cl, Wi, precision=_HP))
    # b_att_eff = b_att + [b_cl|b_cl|b_cl] @ W_att   (b_cl contribution folded in)
    b_att_eff = b_att + jnp.dot(jnp.tile(b_cl, (1, NUM_CAD)), W_att, precision=_HP)
    # biases packed into one [2, 256] operand:
    #   row 0 -> [b_cl | b_head | zeros]  (added to the fused matmul result)
    #   row 1 -> [b_att_eff | zeros]      (added to the recovered attention logits)
    biases = jnp.zeros((2, COMB), jnp.float32)
    biases = biases.at[0, :PROJ].set(b_cl[0])
    biases = biases.at[0, PROJ:PROJ + NCLASS].set(b_head[0])
    biases = biases.at[1, :NUM_CAD].set(b_att_eff[0])
    return W_comb, biases


@jax.jit
def debias_forward(x_stacked, cad_index, kernel_params):
    W_comb, biases = kernel_params

    # effective CAD mask (replaces in-kernel int reductions over cad_index):
    # column i is forced to 1.0 when that CAD column is entirely absent.
    idx = cad_index.astype(jnp.float32)                          # [B, 3]
    has_cad = jnp.sum(idx, axis=0, keepdims=True) != 0.0         # [1, 3]
    eff = jnp.where(has_cad, jnp.where(idx == 0.0, 0.0, 1.0), 1.0)
    eff_p = jnp.zeros((B, LANE_PAD), jnp.float32).at[:, :NUM_CAD].set(eff)

    vmem = lambda: pl.BlockSpec(memory_space=pltpu.MemorySpace.VMEM)
    cost = pl.CostEstimate(
        flops=2 * NSTACK * B * HIDDEN * COMB,
        transcendentals=B * NUM_CAD,
        bytes_accessed=4 * (NSTACK * B * HIDDEN + HIDDEN * COMB + 2 * COMB
                            + 2 * B * LANE_PAD))

    out = pl.pallas_call(
        debias_kernel,
        out_shape=jax.ShapeDtypeStruct((B, LANE_PAD), jnp.float32),
        in_specs=[vmem(), vmem(), vmem(), vmem()],
        out_specs=vmem(),
        cost_estimate=cost,
    )(x_stacked, W_comb, biases, eff_p)

    logits = out[:, :NCLASS]
    clloss = out[0, LOSS_LANE]
    return logits, clloss


def reference(x_stacked, cad_index, params):
    W_cl, b_cl, W_att, b_att, W_head, b_head = params
    origin = x_stacked[0:B]
    masked = x_stacked[B:2 * B]
    cads = [x_stacked[(2 + i) * B:(3 + i) * B] for i in range(NUM_CAD)]

    def dense(x):
        return jnp.dot(x, W_cl, precision=_HP) + b_cl

    def nrm(x):
        n = jnp.linalg.norm(x, axis=-1, keepdims=True)
        return x / jnp.maximum(n, 1e-12)

    def cos(a, b):
        return jnp.sum(a * b, -1) / jnp.maximum(
            jnp.linalg.norm(a, axis=-1) * jnp.linalg.norm(b, axis=-1), 1e-8)

    z1, z2 = dense(origin), dense(masked)
    cs = [dense(c) for c in cads]
    z1n, z2n = nrm(z1), nrm(z2)
    item1 = jnp.mean(cos(z1n, z2n))
    cols = []
    for i in range(NUM_CAD):
        it2 = cos(z1n, nrm(cs[i]))
        idx = cad_index[:, i].astype(jnp.float32)
        mask = jnp.where(idx == 0, 0.0, 1.0)
        it2 = jnp.where(jnp.sum(idx) != 0, it2 * mask, it2)
        cols.append(it2[:, None])
    cad_losses = jnp.concatenate(cols, -1)
    att = jax.nn.softmax(
        jnp.dot(jnp.concatenate(cs, -1), W_att, precision=_HP) + b_att, axis=-1)
    item2 = jnp.mean(jnp.sum(att * cad_losses, -1))
    loss = jnp.maximum(1.0 - item1 + item2, 0.0)
    logits = jnp.dot(origin, W_head, precision=_HP) + b_head
    return logits, loss


if __name__ == "__main__":
    key = jax.random.PRNGKey(0)
    kp, kx, ki = jax.random.split(key, 3)

    params = init_params(kp)
    kernel_params = prepare_kernel_params(params)    # fused/padded once, not per call

    # stacked [5B, 768] CLS hidden states (origin|masked|cad0|cad1|cad2) — stand-in
    # for the BERT backbone outputs, already in the layout the kernel consumes.
    x_stacked = jax.random.normal(kx, (NSTACK * B, HIDDEN), jnp.float32)
    cad_index = jax.random.randint(ki, (B, NUM_CAD), 0, 2, jnp.int32)

    logits, clloss = debias_forward(x_stacked, cad_index, kernel_params)
    jax.block_until_ready((logits, clloss))

    ref_logits, ref_loss = reference(x_stacked, cad_index, params)
    # tolerance leaves headroom for the MXU's f32 matmul path vs the XLA reference
    np.testing.assert_allclose(np.asarray(logits), np.asarray(ref_logits),
                               rtol=2e-3, atol=2e-3)
    np.testing.assert_allclose(float(clloss), float(ref_loss),
                               rtol=2e-3, atol=2e-3)

    print("KERNEL_OK")
</pallas_src>

<mosaic_0001>
module attributes {stable_mosaic.version = 11 : i64} {
  func.func @debias_kernel(%arg0: memref<40x768xf32, #tpu.memory_space<vmem>>, %arg1: memref<768x256xf32, #tpu.memory_space<vmem>>, %arg2: memref<2x256xf32, #tpu.memory_space<vmem>>, %arg3: memref<8x128xf32, #tpu.memory_space<vmem>>, %arg4: memref<8x128xf32, #tpu.memory_space<vmem>>) attributes {dimension_semantics = [], scalar_prefetch = 0 : i64, scratch_operands = 0 : i64, tpu.core_type = #tpu.core_type<tc>} {
    %c0 = arith.constant 0 : index
    %c0_0 = arith.constant 0 : index
    %0 = vector.load %arg2[%c0, %c0_0] : memref<2x256xf32, #tpu.memory_space<vmem>>, vector<2x256xf32>
    %c0_1 = arith.constant 0 : index
    %c0_2 = arith.constant 0 : index
    %1 = vector.load %arg0[%c0_1, %c0_2] : memref<40x768xf32, #tpu.memory_space<vmem>>, vector<40x768xf32>
    %c0_3 = arith.constant 0 : index
    %c0_4 = arith.constant 0 : index
    %2 = vector.load %arg1[%c0_3, %c0_4] : memref<768x256xf32, #tpu.memory_space<vmem>>, vector<768x256xf32>
    %cst = arith.constant dense<0.000000e+00> : vector<40x256xf32>
    %3 = tpu.matmul %1, %2, %cst {dimension_numbers = #tpu.dot_dimension_numbers<[1], [0], [0], [1], [0, 0, 1, 1], [], []>} : vector<40x768xf32>, vector<768x256xf32>, vector<40x256xf32> -> vector<40x256xf32>
    %4 = vector.extract_strided_slice %0 {offsets = [0, 0], sizes = [1, 256], strides = [1, 1]} : vector<2x256xf32> to vector<1x256xf32>
    %5 = vector.broadcast %4 : vector<1x256xf32> to vector<40x256xf32>
    %6 = arith.addf %3, %5 : vector<40x256xf32>
    %7 = vector.extract_strided_slice %6 {offsets = [0, 0], sizes = [40, 128], strides = [1, 1]} : vector<40x256xf32> to vector<40x128xf32>
    %8 = vector.extract_strided_slice %7 {offsets = [0, 0], sizes = [8, 128], strides = [1, 1]} : vector<40x128xf32> to vector<8x128xf32>
    %9 = arith.mulf %7, %7 : vector<40x128xf32>
    %cst_5 = arith.constant dense<0.000000e+00> : vector<40xf32>
    %10 = vector.multi_reduction <add>, %9, %cst_5 [1] : vector<40x128xf32> to vector<40xf32>
    %11 = vector.shape_cast %10 : vector<40xf32> to vector<40x1xf32>
    %12 = tpu.concatenate %8, %8, %8, %8 in 0 : vector<8x128xf32>, vector<8x128xf32>, vector<8x128xf32>, vector<8x128xf32> -> vector<32x128xf32>
    %13 = vector.extract_strided_slice %7 {offsets = [8, 0], sizes = [32, 128], strides = [1, 1]} : vector<40x128xf32> to vector<32x128xf32>
    %14 = arith.mulf %12, %13 : vector<32x128xf32>
    %cst_6 = arith.constant dense<0.000000e+00> : vector<32xf32>
    %15 = vector.multi_reduction <add>, %14, %cst_6 [1] : vector<32x128xf32> to vector<32xf32>
    %16 = vector.shape_cast %15 : vector<32xf32> to vector<32x1xf32>
    %17 = math.sqrt %11 : vector<40x1xf32>
    %18 = vector.extract_strided_slice %17 {offsets = [0, 0], sizes = [8, 1], strides = [1, 1]} : vector<40x1xf32> to vector<8x1xf32>
    %19 = vector.extract_strided_slice %16 {offsets = [0, 0], sizes = [8, 1], strides = [1, 1]} : vector<32x1xf32> to vector<8x1xf32>
    %20 = vector.extract_strided_slice %17 {offsets = [8, 0], sizes = [8, 1], strides = [1, 1]} : vector<40x1xf32> to vector<8x1xf32>
    %21 = arith.mulf %18, %20 : vector<8x1xf32>
    %cst_7 = arith.constant 9.99999993E-9 : f32
    %22 = vector.broadcast %cst_7 : f32 to vector<8x1xf32>
    %23 = arith.maximumf %21, %22 : vector<8x1xf32>
    %24 = arith.divf %19, %23 : vector<8x1xf32>
    %cst_8 = arith.constant dense<0.000000e+00> : vector<1xf32>
    %25 = vector.multi_reduction <add>, %24, %cst_8 [0] : vector<8x1xf32> to vector<1xf32>
    %26 = vector.shape_cast %25 : vector<1xf32> to vector<1x1xf32>
    %cst_9 = arith.constant 8.000000e+00 : f32
    %27 = vector.broadcast %cst_9 : f32 to vector<1x1xf32>
    %28 = arith.divf %26, %27 : vector<1x1xf32>
    %c0_10 = arith.constant 0 : index
    %c0_11 = arith.constant 0 : index
    %29 = vector.load %arg3[%c0_10, %c0_11] : memref<8x128xf32, #tpu.memory_space<vmem>>, vector<8x128xf32>
    %30 = vector.extract_strided_slice %16 {offsets = [8, 0], sizes = [8, 1], strides = [1, 1]} : vector<32x1xf32> to vector<8x1xf32>
    %31 = vector.extract_strided_slice %17 {offsets = [16, 0], sizes = [8, 1], strides = [1, 1]} : vector<40x1xf32> to vector<8x1xf32>
    %32 = arith.mulf %18, %31 : vector<8x1xf32>
    %cst_12 = arith.constant 9.99999993E-9 : f32
    %33 = vector.broadcast %cst_12 : f32 to vector<8x1xf32>
    %34 = arith.maximumf %32, %33 : vector<8x1xf32>
    %35 = arith.divf %30, %34 : vector<8x1xf32>
    %36 = vector.extract_strided_slice %29 {offsets = [0, 0], sizes = [8, 1], strides = [1, 1]} : vector<8x128xf32> to vector<8x1xf32>
    %37 = arith.mulf %35, %36 : vector<8x1xf32>
    %38 = vector.extract_strided_slice %16 {offsets = [16, 0], sizes = [8, 1], strides = [1, 1]} : vector<32x1xf32> to vector<8x1xf32>
    %39 = vector.extract_strided_slice %17 {offsets = [24, 0], sizes = [8, 1], strides = [1, 1]} : vector<40x1xf32> to vector<8x1xf32>
    %40 = arith.mulf %18, %39 : vector<8x1xf32>
    %cst_13 = arith.constant 9.99999993E-9 : f32
    %41 = vector.broadcast %cst_13 : f32 to vector<8x1xf32>
    %42 = arith.maximumf %40, %41 : vector<8x1xf32>
    %43 = arith.divf %38, %42 : vector<8x1xf32>
    %44 = vector.extract_strided_slice %29 {offsets = [0, 1], sizes = [8, 1], strides = [1, 1]} : vector<8x128xf32> to vector<8x1xf32>
    %45 = arith.mulf %43, %44 : vector<8x1xf32>
    %46 = vector.extract_strided_slice %16 {offsets = [24, 0], sizes = [8, 1], strides = [1, 1]} : vector<32x1xf32> to vector<8x1xf32>
    %47 = vector.extract_strided_slice %17 {offsets = [32, 0], sizes = [8, 1], strides = [1, 1]} : vector<40x1xf32> to vector<8x1xf32>
    %48 = arith.mulf %18, %47 : vector<8x1xf32>
    %cst_14 = arith.constant 9.99999993E-9 : f32
    %49 = vector.broadcast %cst_14 : f32 to vector<8x1xf32>
    %50 = arith.maximumf %48, %49 : vector<8x1xf32>
    %51 = arith.divf %46, %50 : vector<8x1xf32>
    %52 = vector.extract_strided_slice %29 {offsets = [0, 2], sizes = [8, 1], strides = [1, 1]} : vector<8x128xf32> to vector<8x1xf32>
    %53 = arith.mulf %51, %52 : vector<8x1xf32>
    %54 = vector.extract_strided_slice %6 {offsets = [16, 131], sizes = [8, 3], strides = [1, 1]} : vector<40x256xf32> to vector<8x3xf32>
    %55 = vector.extract_strided_slice %6 {offsets = [24, 134], sizes = [8, 3], strides = [1, 1]} : vector<40x256xf32> to vector<8x3xf32>
    %56 = arith.addf %54, %55 : vector<8x3xf32>
    %57 = vector.extract_strided_slice %6 {offsets = [32, 137], sizes = [8, 3], strides = [1, 1]} : vector<40x256xf32> to vector<8x3xf32>
    %58 = arith.addf %56, %57 : vector<8x3xf32>
    %59 = vector.extract_strided_slice %0 {offsets = [1, 0], sizes = [1, 3], strides = [1, 1]} : vector<2x256xf32> to vector<1x3xf32>
    %60 = vector.broadcast %59 : vector<1x3xf32> to vector<8x3xf32>
    %61 = arith.addf %58, %60 : vector<8x3xf32>
    %cst_15 = arith.constant dense<0xFF800000> : vector<8xf32>
    %62 = vector.multi_reduction <maximumf>, %61, %cst_15 [1] : vector<8x3xf32> to vector<8xf32>
    %cst_16 = arith.constant 0xFF800000 : f32
    %63 = vector.broadcast %cst_16 : f32 to vector<8xf32>
    %64 = arith.maximumf %63, %62 : vector<8xf32>
    %65 = vector.shape_cast %64 : vector<8xf32> to vector<8x1xf32>
    %66 = vector.broadcast %65 : vector<8x1xf32> to vector<8x3xf32>
    %67 = arith.subf %61, %66 : vector<8x3xf32>
    %68 = math.exp %67 : vector<8x3xf32>
    %cst_17 = arith.constant dense<0.000000e+00> : vector<8xf32>
    %69 = vector.multi_reduction <add>, %68, %cst_17 [1] : vector<8x3xf32> to vector<8xf32>
    %70 = vector.shape_cast %69 : vector<8xf32> to vector<8x1xf32>
    %71 = vector.broadcast %70 : vector<8x1xf32> to vector<8x3xf32>
    %72 = arith.divf %68, %71 : vector<8x3xf32>
    %73 = vector.extract_strided_slice %72 {offsets = [0, 0], sizes = [8, 1], strides = [1, 1]} : vector<8x3xf32> to vector<8x1xf32>
    %74 = arith.mulf %73, %37 : vector<8x1xf32>
    %75 = vector.extract_strided_slice %72 {offsets = [0, 1], sizes = [8, 1], strides = [1, 1]} : vector<8x3xf32> to vector<8x1xf32>
    %76 = arith.mulf %75, %45 : vector<8x1xf32>
    %77 = arith.addf %74, %76 : vector<8x1xf32>
    %78 = vector.extract_strided_slice %72 {offsets = [0, 2], sizes = [8, 1], strides = [1, 1]} : vector<8x3xf32> to vector<8x1xf32>
    %79 = arith.mulf %78, %53 : vector<8x1xf32>
    %80 = arith.addf %77, %79 : vector<8x1xf32>
    %cst_18 = arith.constant dense<0.000000e+00> : vector<1xf32>
    %81 = vector.multi_reduction <add>, %80, %cst_18 [0] : vector<8x1xf32> to vector<1xf32>
    %82 = vector.shape_cast %81 : vector<1xf32> to vector<1x1xf32>
    %cst_19 = arith.constant 8.000000e+00 : f32
    %83 = vector.broadcast %cst_19 : f32 to vector<1x1xf32>
    %84 = arith.divf %82, %83 : vector<1x1xf32>
    %cst_20 = arith.constant 1.000000e+00 : f32
    %85 = vector.broadcast %cst_20 : f32 to vector<1x1xf32>
    %86 = arith.subf %85, %28 : vector<1x1xf32>
    %87 = arith.addf %86, %84 : vector<1x1xf32>
    %cst_21 = arith.constant 0.000000e+00 : f32
    %88 = vector.broadcast %cst_21 : f32 to vector<1x1xf32>
    %89 = arith.maximumf %87, %88 : vector<1x1xf32>
    %90 = vector.extract_strided_slice %6 {offsets = [0, 128], sizes = [8, 128], strides = [1, 1]} : vector<40x256xf32> to vector<8x128xf32>
    %91 = tpu.iota {dimensions = array<i32: 0>} : vector<8x128xi32>
    %92 = tpu.iota {dimensions = array<i32: 1>} : vector<8x128xi32>
    %c0_i32 = arith.constant 0 : i32
    %93 = vector.broadcast %c0_i32 : i32 to vector<8x128xi32>
    %94 = arith.cmpi eq, %91, %93 : vector<8x128xi32>
    %c127_i32 = arith.constant 127 : i32
    %95 = vector.broadcast %c127_i32 : i32 to vector<8x128xi32>
    %96 = arith.cmpi eq, %92, %95 : vector<8x128xi32>
    %97 = arith.andi %94, %96 : vector<8x128xi1>
    %98 = vector.shape_cast %89 : vector<1x1xf32> to vector<1x1xf32>
    %99 = vector.broadcast %98 : vector<1x1xf32> to vector<8x128xf32>
    %100 = arith.select %97, %99, %90 : vector<8x128xi1>, vector<8x128xf32>
    %c0_22 = arith.constant 0 : index
    %c0_23 = arith.constant 0 : index
    %101 = vector.load %arg4[%c0_22, %c0_23] : memref<8x128xf32, #tpu.memory_space<vmem>>, vector<8x128xf32>
    tpu.vector_store %arg4[%c0_22, %c0_23], %100 {strides = array<i32>} : memref<8x128xf32, #tpu.memory_space<vmem>>, vector<8x128xf32>,
    return
  }
}

</mosaic_0001>

<llo_original>
// kernel: debias_forward.1
$region0: #{debias_forward.1}
  #allocation0 [shape = 'u32[]', space=smem, size = 0x4, offset = 0x4, fixed_abs, tag = 'smem constant byte address 0x4 - core index']
  #allocation1 [shape = 'u32[72,128]{1,0:T(1,128)}', space=vmem, size = 0x9000, scoped, tag = 'internal scratch']
  %s0 = inlined_call_operand.hbm [shape: f32[40,768], index: 0, kind: input, shape index: {}]
  %s1 = inlined_call_operand.hbm [shape: f32[768,256], index: 1, kind: input, shape index: {}]
  %s2 = inlined_call_operand.vmem [shape: f32[2,256], index: 2, kind: input, shape index: {}]
  %s3 = inlined_call_operand.vmem [shape: f32[8,128], index: 3, kind: input, shape index: {}]
  %s4 = inlined_call_operand.vmem [shape: f32[8,128], index: 4, kind: output, shape index: {}]
  %s5 = sld [smem:[#allocation0]]
  $region34: #{debias_forward.1} parent=0
    _
  %s7 = ssub.s32 1, %s5
  %s8 = scalar_select 0, %s7, %s5
  $region1: #{debias_forward.1} parent=0
    #allocation2 [shape = 'u8[122880]{0}', space=vmem, size = 0x1e000, scoped, tag = 'input window, operand 0, single buffered']
    #allocation3 [shape = 's32[1]{0}', space=sflag, size = 0x4, scoped, tag = 'scoped memory for debias_forward.1']
    #allocation4 [shape = 'u8[786432]{0}', space=vmem, size = 0xc0000, scoped, tag = 'input window, operand 1, single buffered']
    #allocation5 [shape = 's32[1]{0}', space=sflag, size = 0x4, scoped, tag = 'scoped memory for debias_forward.1']
    %9 = vsyncpa [#allocation3], 0
    %10 = vsyncpa [#allocation5], 0
    // Predicated region
    $region2: #{debias_forward.1} parent=1 // pred_check
      _
    $region3: #{debias_forward.1} parent=1 // pred_check_branch
      %12 = sbr.rel (0) target = $region5
    $region4: #{debias_forward.1} parent=1 // pred_region
      %14 = vsyncadd [#allocation3], 0
      %s15 = sshll.u32 %s0, 4
      %s16 = int_to_ptr.hbm [resolvable:$true] %s15
      %s17 = sshll.u32 [#allocation2], 4
      %s18 = int_to_ptr.vmem [resolvable:$true] %s17
      %23 = dma.hbm_to_vmem [thread:$0]  %s16, 3840, %s18, [#allocation3], 768, 768, 48
    $region5: #{debias_forward.1} parent=1 // pred_fallthru
      _
    // Predicated region
    $region6: #{debias_forward.1} parent=1 // pred_check
      _
    $region7: #{debias_forward.1} parent=1 // pred_check_branch
      %25 = sbr.rel (0) target = $region9
    $region8: #{debias_forward.1} parent=1 // pred_region
      %27 = vsyncadd [#allocation5], 0
      %s28 = sshll.u32 %s1, 4
      %s29 = int_to_ptr.hbm [resolvable:$true] %s28
      %s30 = sshll.u32 [#allocation4], 4
      %s31 = int_to_ptr.vmem [resolvable:$true] %s30
      %36 = dma.hbm_to_vmem [thread:$0]  %s29, 24576, %s31, [#allocation5], 256, 256, 16
    $region9: #{debias_forward.1} parent=1 // pred_fallthru
      _
    // Predicated region
    $region10: #{debias_forward.1} parent=1 // pred_check
      _
    $region11: #{debias_forward.1} parent=1 // pred_check_branch
      %38 = sbr.rel (0) target = $region13
    $region12: #{debias_forward.1} parent=1 // pred_region
      _
    $region13: #{debias_forward.1} parent=1 // pred_fallthru
      _
    // Predicated region
    $region14: #{debias_forward.1} parent=1 // pred_check
      _
    $region15: #{debias_forward.1} parent=1 // pred_check_branch
      %40 = sbr.rel (0) target = $region17
    $region16: #{debias_forward.1} parent=1 // pred_region
      _
    $region17: #{debias_forward.1} parent=1 // pred_fallthru
      _
    // Predicated region
    $region18: #{debias_forward.1} parent=1 // pred_check
      _
    $region19: #{debias_forward.1} parent=1 // pred_check_branch
      %42 = sbr.rel (0) target = $region21
    $region20: #{debias_forward.1} parent=1 // pred_region
      %44 = dma.done [#allocation3], 3840
    $region21: #{debias_forward.1} parent=1 // pred_fallthru
      _
    // Predicated region
    $region22: #{debias_forward.1} parent=1 // pred_check
      _
    $region23: #{debias_forward.1} parent=1 // pred_check_branch
      %46 = sbr.rel (0) target = $region25
    $region24: #{debias_forward.1} parent=1 // pred_region
      %48 = dma.done [#allocation5], 24576
    $region25: #{debias_forward.1} parent=1 // pred_fallthru
      _
    %v49 = vld [vmem:[%s2] sm:$0xf]
    %v50 = vld [vmem:[#allocation2] sm:$0xff]
    %v51 = vld [vmem:[#allocation2 + $0x8] sm:$0xff]
    %v52 = vld [vmem:[#allocation2 + $0x10] sm:$0xff]
    %v53 = vld [vmem:[#allocation2 + $0x18] sm:$0xff]
    %v54 = vld [vmem:[#allocation2 + $0x20] sm:$0xff]
    %v55 = vld [vmem:[#allocation2 + $0x28] sm:$0xff]
    %v56 = vld [vmem:[#allocation2 + $0x30] sm:$0xff]
    %v57 = vld [vmem:[#allocation2 + $0x38] sm:$0xff]
    %v58 = vld [vmem:[#allocation2 + $0x40] sm:$0xff]
    %v59 = vld [vmem:[#allocation2 + $0x48] sm:$0xff]
    %v60 = vld [vmem:[#allocation2 + $0x50] sm:$0xff]
    %v61 = vld [vmem:[#allocation2 + $0x58] sm:$0xff]
    %v62 = vld [vmem:[#allocation2 + $0x60] sm:$0xff]
    %v63 = vld [vmem:[#allocation2 + $0x68] sm:$0xff]
    %v64 = vld [vmem:[#allocation2 + $0x70] sm:$0xff]
    %v65 = vld [vmem:[#allocation2 + $0x78] sm:$0xff]
    %v66 = vld [vmem:[#allocation2 + $0x80] sm:$0xff]
    %v67 = vld [vmem:[#allocation2 + $0x88] sm:$0xff]
    %v68 = vld [vmem:[#allocation2 + $0x90] sm:$0xff]
    %v69 = vld [vmem:[#allocation2 + $0x98] sm:$0xff]
    %v70 = vld [vmem:[#allocation2 + $0xa0] sm:$0xff]
    %v71 = vld [vmem:[#allocation2 + $0xa8] sm:$0xff]
    %v72 = vld [vmem:[#allocation2 + $0xb0] sm:$0xff]
    %v73 = vld [vmem:[#allocation2 + $0xb8] sm:$0xff]
    %v74 = vld [vmem:[#allocation2 + $0xc0] sm:$0xff]
    %v75 = vld [vmem:[#allocation2 + $0xc8] sm:$0xff]
    %v76 = vld [vmem:[#allocation2 + $0xd0] sm:$0xff]
    %v77 = vld [vmem:[#allocation2 + $0xd8] sm:$0xff]
    %v78 = vld [vmem:[#allocation2 + $0xe0] sm:$0xff]
    %v79 = vld [vmem:[#allocation2 + $0xe8] sm:$0xff]
    %v80 = vld [vmem:[#allocation4] sm:$0xff]
    %v81 = vld [vmem:[#allocation4 + $0x8] sm:$0xff]
    %v82 = vld [vmem:[#allocation4 + $0x10] sm:$0xff]
    %v83 = vld [vmem:[#allocation4 + $0x18] sm:$0xff]
    %v84 = vld [vmem:[#allocation4 + $0x20] sm:$0xff]
    %v85 = vld [vmem:[#allocation4 + $0x28] sm:$0xff]
    %v86 = vld [vmem:[#allocation4 + $0x30] sm:$0xff]
    %v87 = vld [vmem:[#allocation4 + $0x38] sm:$0xff]
    %v88 = vld [vmem:[#allocation4 + $0x40] sm:$0xff]
    %v89 = vld [vmem:[#allocation4 + $0x48] sm:$0xff]
    %v90 = vld [vmem:[#allocation4 + $0x50] sm:$0xff]
    %v91 = vld [vmem:[#allocation4 + $0x58] sm:$0xff]
    %v92 = vld [vmem:[#allocation4 + $0x60] sm:$0xff]
    %v93 = vld [vmem:[#allocation4 + $0x68] sm:$0xff]
    %v94 = vld [vmem:[#allocation4 + $0x70] sm:$0xff]
    %v95 = vld [vmem:[#allocation4 + $0x78] sm:$0xff]
    %v96 = vld [vmem:[#allocation4 + $0x80] sm:$0xff]
    %v97 = vld [vmem:[#allocation4 + $0x88] sm:$0xff]
    %v98 = vld [vmem:[#allocation4 + $0x90] sm:$0xff]
    %v99 = vld [vmem:[#allocation4 + $0x98] sm:$0xff]
    %v100 = vld [vmem:[#allocation4 + $0xa0] sm:$0xff]
    %v101 = vld [vmem:[#allocation4 + $0xa8] sm:$0xff]
    %v102 = vld [vmem:[#allocation4 + $0xb0] sm:$0xff]
    %v103 = vld [vmem:[#allocation4 + $0xb8] sm:$0xff]
    %v104 = vld [vmem:[#allocation4 + $0xc0] sm:$0xff]
    %v105 = vld [vmem:[#allocation4 + $0xc8] sm:$0xff]
    %v106 = vld [vmem:[#allocation4 + $0xd0] sm:$0xff]
    %v107 = vld [vmem:[#allocation4 + $0xd8] sm:$0xff]
    %v108 = vld [vmem:[#allocation4 + $0xe0] sm:$0xff]
    %v109 = vld [vmem:[#allocation4 + $0xe8] sm:$0xff]
    %v110 = vld [vmem:[#allocation4 + $0xf0] sm:$0xff]
    %v111 = vld [vmem:[#allocation4 + $0xf8] sm:$0xff]
    %v112 = vld [vmem:[#allocation4 + $0x100] sm:$0xff]
    %v113 = vld [vmem:[#allocation4 + $0x108] sm:$0xff]
    %v114 = vld [vmem:[#allocation4 + $0x110] sm:$0xff]
    %v115 = vld [vmem:[#allocation4 + $0x118] sm:$0xff]
    %v116 = vld [vmem:[#allocation4 + $0x120] sm:$0xff]
    %v117 = vld [vmem:[#allocation4 + $0x128] sm:$0xff]
    %v118 = vld [vmem:[#allocation4 + $0x130] sm:$0xff]
    %v119 = vld [vmem:[#allocation4 + $0x138] sm:$0xff]
    %v120 = vld [vmem:[#allocation4 + $0x140] sm:$0xff]
    %v121 = vld [vmem:[#allocation4 + $0x148] sm:$0xff]
    %v122 = vld [vmem:[#allocation4 + $0x150] sm:$0xff]
    %v123 = vld [vmem:[#allocation4 + $0x158] sm:$0xff]
    %v124 = vld [vmem:[#allocation4 + $0x160] sm:$0xff]
    %v125 = vld [vmem:[#allocation4 + $0x168] sm:$0xff]
    %v126 = vld [vmem:[#allocation4 + $0x170] sm:$0xff]
    %v127 = vld [vmem:[#allocation4 + $0x178] sm:$0xff]
    %v128 = vld [vmem:[#allocation4 + $0x180] sm:$0xff]
    %v129 = vld [vmem:[#allocation4 + $0x188] sm:$0xff]
    %v130 = vld [vmem:[#allocation4 + $0x190] sm:$0xff]
    %v131 = vld [vmem:[#allocation4 + $0x198] sm:$0xff]
    %v132 = vld [vmem:[#allocation4 + $0x1a0] sm:$0xff]
    %v133 = vld [vmem:[#allocation4 + $0x1a8] sm:$0xff]
    %v134 = vld [vmem:[#allocation4 + $0x1b0] sm:$0xff]
    %v135 = vld [vmem:[#allocation4 + $0x1b8] sm:$0xff]
    %v136 = vld [vmem:[#allocation4 + $0x1c0] sm:$0xff]
    %v137 = vld [vmem:[#allocation4 + $0x1c8] sm:$0xff]
    %v138 = vld [vmem:[#allocation4 + $0x1d0] sm:$0xff]
    %v139 = vld [vmem:[#allocation4 + $0x1d8] sm:$0xff]
    %v140 = vld [vmem:[#allocation4 + $0x1e0] sm:$0xff]
    %v141 = vld [vmem:[#allocation4 + $0x1e8] sm:$0xff]
    %v142 = vld [vmem:[#allocation4 + $0x1f0] sm:$0xff]
    %v143 = vld [vmem:[#allocation4 + $0x1f8] sm:$0xff]
    %v144 = vld [vmem:[#allocation4 + $0x200] sm:$0xff]
    %v145 = vld [vmem:[#allocation4 + $0x208] sm:$0xff]
    %v146 = vld [vmem:[#allocation4 + $0x210] sm:$0xff]
    %v147 = vld [vmem:[#allocation4 + $0x218] sm:$0xff]
    %v148 = vld [vmem:[#allocation4 + $0x220] sm:$0xff]
    %v149 = vld [vmem:[#allocation4 + $0x228] sm:$0xff]
    %v150 = vld [vmem:[#allocation4 + $0x230] sm:$0xff]
    %v151 = vld [vmem:[#allocation4 + $0x238] sm:$0xff]
    %v152 = vld [vmem:[#allocation4 + $0x240] sm:$0xff]
    %v153 = vld [vmem:[#allocation4 + $0x248] sm:$0xff]
    %v154 = vld [vmem:[#allocation4 + $0x250] sm:$0xff]
    %v155 = vld [vmem:[#allocation4 + $0x258] sm:$0xff]
    %v156 = vld [vmem:[#allocation4 + $0x260] sm:$0xff]
    %v157 = vld [vmem:[#allocation4 + $0x268] sm:$0xff]
    %v158 = vld [vmem:[#allocation4 + $0x270] sm:$0xff]
    %v159 = vld [vmem:[#allocation4 + $0x278] sm:$0xff]
    %v160 = vld [vmem:[#allocation4 + $0x280] sm:$0xff]
    %v161 = vld [vmem:[#allocation4 + $0x288] sm:$0xff]
    %v162 = vld [vmem:[#allocation4 + $0x290] sm:$0xff]
    %v163 = vld [vmem:[#allocation4 + $0x298] sm:$0xff]
    %v164 = vld [vmem:[#allocation4 + $0x2a0] sm:$0xff]
    %v165 = vld [vmem:[#allocation4 + $0x2a8] sm:$0xff]
    %v166 = vld [vmem:[#allocation4 + $0x2b0] sm:$0xff]
    %v167 = vld [vmem:[#allocation4 + $0x2b8] sm:$0xff]
    %v168 = vld [vmem:[#allocation4 + $0x2c0] sm:$0xff]
    %v169 = vld [vmem:[#allocation4 + $0x2c8] sm:$0xff]
    %v170 = vld [vmem:[#allocation4 + $0x2d0] sm:$0xff]
    %v171 = vld [vmem:[#allocation4 + $0x2d8] sm:$0xff]
    %v172 = vld [vmem:[#allocation4 + $0x2e0] sm:$0xff]
    %v173 = vld [vmem:[#allocation4 + $0x2e8] sm:$0xff]
    %v174 = vld [vmem:[#allocation4 + $0x2f0] sm:$0xff]
    %v175 = vld [vmem:[#allocation4 + $0x2f8] sm:$0xff]
    %v176 = vld [vmem:[#allocation4 + $0x300] sm:$0xff]
    %v177 = vld [vmem:[#allocation4 + $0x308] sm:$0xff]
    %v178 = vld [vmem:[#allocation4 + $0x310] sm:$0xff]
    %v179 = vld [vmem:[#allocation4 + $0x318] sm:$0xff]
    %v180 = vld [vmem:[#allocation4 + $0x320] sm:$0xff]
    %v181 = vld [vmem:[#allocation4 + $0x328] sm:$0xff]
    %v182 = vld [vmem:[#allocation4 + $0x330] sm:$0xff]
    %v183 = vld [vmem:[#allocation4 + $0x338] sm:$0xff]
    %v184 = vld [vmem:[#allocation4 + $0x340] sm:$0xff]
    %v185 = vld [vmem:[#allocation4 + $0x348] sm:$0xff]
    %v186 = vld [vmem:[#allocation4 + $0x350] sm:$0xff]
    %v187 = vld [vmem:[#allocation4 + $0x358] sm:$0xff]
    %v188 = vld [vmem:[#allocation4 + $0x360] sm:$0xff]
    %v189 = vld [vmem:[#allocation4 + $0x368] sm:$0xff]
    %v190 = vld [vmem:[#allocation4 + $0x370] sm:$0xff]
    %v191 = vld [vmem:[#allocation4 + $0x378] sm:$0xff]
    %v192 = vld [vmem:[#allocation4 + $0x380] sm:$0xff]
    %v193 = vld [vmem:[#allocation4 + $0x388] sm:$0xff]
    %v194 = vld [vmem:[#allocation4 + $0x390] sm:$0xff]
    %v195 = vld [vmem:[#allocation4 + $0x398] sm:$0xff]
    %v196 = vld [vmem:[#allocation4 + $0x3a0] sm:$0xff]
    %v197 = vld [vmem:[#allocation4 + $0x3a8] sm:$0xff]
    %v198 = vld [vmem:[#allocation4 + $0x3b0] sm:$0xff]
    %v199 = vld [vmem:[#allocation4 + $0x3b8] sm:$0xff]
    %v200 = vld [vmem:[#allocation4 + $0x3c0] sm:$0xff]
    %v201 = vld [vmem:[#allocation4 + $0x3c8] sm:$0xff]
    %v202 = vld [vmem:[#allocation4 + $0x3d0] sm:$0xff]
    %v203 = vld [vmem:[#allocation4 + $0x3d8] sm:$0xff]
    %v204 = vld [vmem:[#allocation4 + $0x3e0] sm:$0xff]
    %v205 = vld [vmem:[#allocation4 + $0x3e8] sm:$0xff]
    %v206 = vld [vmem:[#allocation4 + $0x3f0] sm:$0xff]
    %v207 = vld [vmem:[#allocation4 + $0x3f8] sm:$0xff]
    %v208 = vld [vmem:[#allocation4 + $0x400] sm:$0xff]
    %v209 = vld [vmem:[#allocation4 + $0x408] sm:$0xff]
    %v210 = vld [vmem:[#allocation4 + $0x410] sm:$0xff]
    %v211 = vld [vmem:[#allocation4 + $0x418] sm:$0xff]
    %v212 = vld [vmem:[#allocation4 + $0x420] sm:$0xff]
    %v213 = vld [vmem:[#allocation4 + $0x428] sm:$0xff]
    %v214 = vld [vmem:[#allocation4 + $0x430] sm:$0xff]
    %v215 = vld [vmem:[#allocation4 + $0x438] sm:$0xff]
    %v216 = vld [vmem:[#allocation4 + $0x440] sm:$0xff]
    %v217 = vld [vmem:[#allocation4 + $0x448] sm:$0xff]
    %v218 = vld [vmem:[#allocation4 + $0x450] sm:$0xff]
    %v219 = vld [vmem:[#allocation4 + $0x458] sm:$0xff]
    %v220 = vld [vmem:[#allocation4 + $0x460] sm:$0xff]
    %v221 = vld [vmem:[#allocation4 + $0x468] sm:$0xff]
    %v222 = vld [vmem:[#allocation4 + $0x470] sm:$0xff]
    %v223 = vld [vmem:[#allocation4 + $0x478] sm:$0xff]
    %v224 = vld [vmem:[#allocation4 + $0x480] sm:$0xff]
    %v225 = vld [vmem:[#allocation4 + $0x488] sm:$0xff]
    %v226 = vld [vmem:[#allocation4 + $0x490] sm:$0xff]
    %v227 = vld [vmem:[#allocation4 + $0x498] sm:$0xff]
    %v228 = vld [vmem:[#allocation4 + $0x4a0] sm:$0xff]
    %v229 = vld [vmem:[#allocation4 + $0x4a8] sm:$0xff]
    %v230 = vld [vmem:[#allocation4 + $0x4b0] sm:$0xff]
    %v231 = vld [vmem:[#allocation4 + $0x4b8] sm:$0xff]
    %v232 = vld [vmem:[#allocation4 + $0x4c0] sm:$0xff]
    %v233 = vld [vmem:[#allocation4 + $0x4c8] sm:$0xff]
    %v234 = vld [vmem:[#allocation4 + $0x4d0] sm:$0xff]
    %v235 = vld [vmem:[#allocation4 + $0x4d8] sm:$0xff]
    %v236 = vld [vmem:[#allocation4 + $0x4e0] sm:$0xff]
    %v237 = vld [vmem:[#allocation4 + $0x4e8] sm:$0xff]
    %v238 = vld [vmem:[#allocation4 + $0x4f0] sm:$0xff]
    %v239 = vld [vmem:[#allocation4 + $0x4f8] sm:$0xff]
    %v240 = vld [vmem:[#allocation4 + $0x500] sm:$0xff]
    %v241 = vld [vmem:[#allocation4 + $0x508] sm:$0xff]
    %v242 = vld [vmem:[#allocation4 + $0x510] sm:$0xff]
    %v243 = vld [vmem:[#allocation4 + $0x518] sm:$0xff]
    %v244 = vld [vmem:[#allocation4 + $0x520] sm:$0xff]
    %v245 = vld [vmem:[#allocation4 + $0x528] sm:$0xff]
    %v246 = vld [vmem:[#allocation4 + $0x530] sm:$0xff]
    %v247 = vld [vmem:[#allocation4 + $0x538] sm:$0xff]
    %v248 = vld [vmem:[#allocation4 + $0x540] sm:$0xff]
    %v249 = vld [vmem:[#allocation4 + $0x548] sm:$0xff]
    %v250 = vld [vmem:[#allocation4 + $0x550] sm:$0xff]
    %v251 = vld [vmem:[#allocation4 + $0x558] sm:$0xff]
    %v252 = vld [vmem:[#allocation4 + $0x560] sm:$0xff]
    %v253 = vld [vmem:[#allocation4 + $0x568] sm:$0xff]
    %v254 = vld [vmem:[#allocation4 + $0x570] sm:$0xff]
    %v255 = vld [vmem:[#allocation4 + $0x578] sm:$0xff]
    %v256 = vld [vmem:[#allocation4 + $0x580] sm:$0xff]
    %v257 = vld [vmem:[#allocation4 + $0x588] sm:$0xff]
    %v258 = vld [vmem:[#allocation4 + $0x590] sm:$0xff]
    %v259 = vld [vmem:[#allocation4 + $0x598] sm:$0xff]
    %v260 = vld [vmem:[#allocation4 + $0x5a0] sm:$0xff]
    %v261 = vld [vmem:[#allocation4 + $0x5a8] sm:$0xff]
    %v262 = vld [vmem:[#allocation4 + $0x5b0] sm:$0xff]
    %v263 = vld [vmem:[#allocation4 + $0x5b8] sm:$0xff]
    %v264 = vld [vmem:[#allocation4 + $0x5c0] sm:$0xff]
    %v265 = vld [vmem:[#allocation4 + $0x5c8] sm:$0xff]
    %v266 = vld [vmem:[#allocation4 + $0x5d0] sm:$0xff]
    %v267 = vld [vmem:[#allocation4 + $0x5d8] sm:$0xff]
    %v268 = vld [vmem:[#allocation4 + $0x5e0] sm:$0xff]
    %v269 = vld [vmem:[#allocation4 + $0x5e8] sm:$0xff]
    %v270 = vld [vmem:[#allocation4 + $0x5f0] sm:$0xff]
    %v271 = vld [vmem:[#allocation4 + $0x5f8] sm:$0xff]
    %v273 = vperm.slane %v49, 0
    %v274 = vperm.slane %v49, 2
    %v277 = vperm.slane %v273, 0
    %v278 = vperm.slane %v274, 0
    %279 = vmatpush.msra.mxu0 %v110
    %280 = vmatpush.msra.mxu0 %v108
    %281 = vmatpush.msra.mxu0 %v106
    %282 = vmatpush.msra.mxu0 %v104
    %283 = vmatpush.msra.mxu0 %v102
    %284 = vmatpush.msra.mxu0 %v100
    %285 = vmatpush.msra.mxu0 %v98
    %286 = vmatpush.msra.mxu0 %v96
    %287 = vmatpush.msra.mxu0 %v94
    %288 = vmatpush.msra.mxu0 %v92
    %289 = vmatpush.msra.mxu0 %v90
    %290 = vmatpush.msra.mxu0 %v88
    %291 = vmatpush.msra.mxu0 %v86
    %292 = vmatpush.msra.mxu0 %v84
    %293 = vmatpush.msra.mxu0 %v82
    %294 = vmatpush.msra.mxu0 %v80
    %295 = vmatmul.f32.gmra.mxu0 %v50
    %v296 = vpop.f32.mrf.mxu0
    %v297 = vadd.f32 %v277, %v296
    %298 = vmatmul.f32.gmra.mxu0 %v56
    %v299 = vpop.f32.mrf.mxu0
    %v300 = vadd.f32 %v277, %v299
    %301 = vmatmul.f32.gmra.mxu0 %v62
    %v302 = vpop.f32.mrf.mxu0
    %v303 = vadd.f32 %v277, %v302
    %304 = vmatmul.f32.gmra.mxu0 %v68
    %v305 = vpop.f32.mrf.mxu0
    %v306 = vadd.f32 %v277, %v305
    %307 = vmatmul.f32.gmra.mxu0 %v74
    %v308 = vpop.f32.mrf.mxu0
    %v309 = vadd.f32 %v277, %v308
    %310 = vdwg.mxu0
    %311 = vmatpush.msra.mxu0 %v142
    %312 = vmatpush.msra.mxu0 %v140
    %313 = vmatpush.msra.mxu0 %v138
    %314 = vmatpush.msra.mxu0 %v136
    %315 = vmatpush.msra.mxu0 %v134
    %316 = vmatpush.msra.mxu0 %v132
    %317 = vmatpush.msra.mxu0 %v130
    %318 = vmatpush.msra.mxu0 %v128
    %319 = vmatpush.msra.mxu0 %v126
    %320 = vmatpush.msra.mxu0 %v124
    %321 = vmatpush.msra.mxu0 %v122
    %322 = vmatpush.msra.mxu0 %v120
    %323 = vmatpush.msra.mxu0 %v118
    %324 = vmatpush.msra.mxu0 %v116
    %325 = vmatpush.msra.mxu0 %v114
    %326 = vmatpush.msra.mxu0 %v112
    %327 = vmatmul.f32.gmra.mxu0 %v51
    %v328 = vpop.f32.mrf.mxu0
    %v329 = vadd.f32 %v297, %v328
    %330 = vmatmul.f32.gmra.mxu0 %v57
    %v331 = vpop.f32.mrf.mxu0
    %v332 = vadd.f32 %v300, %v331
    %333 = vmatmul.f32.gmra.mxu0 %v63
    %v334 = vpop.f32.mrf.mxu0
    %v335 = vadd.f32 %v303, %v334
    %336 = vmatmul.f32.gmra.mxu0 %v69
    %v337 = vpop.f32.mrf.mxu0
    %v338 = vadd.f32 %v306, %v337
    %339 = vmatmul.f32.gmra.mxu0 %v75
    %v340 = vpop.f32.mrf.mxu0
    %v341 = vadd.f32 %v309, %v340
    %342 = vdwg.mxu0
    %343 = vmatpush.msra.mxu0 %v174
    %344 = vmatpush.msra.mxu0 %v172
    %345 = vmatpush.msra.mxu0 %v170
    %346 = vmatpush.msra.mxu0 %v168
    %347 = vmatpush.msra.mxu0 %v166
    %348 = vmatpush.msra.mxu0 %v164
    %349 = vmatpush.msra.mxu0 %v162
    %350 = vmatpush.msra.mxu0 %v160
    %351 = vmatpush.msra.mxu0 %v158
    %352 = vmatpush.msra.mxu0 %v156
    %353 = vmatpush.msra.mxu0 %v154
    %354 = vmatpush.msra.mxu0 %v152
    %355 = vmatpush.msra.mxu0 %v150
    %356 = vmatpush.msra.mxu0 %v148
    %357 = vmatpush.msra.mxu0 %v146
    %358 = vmatpush.msra.mxu0 %v144
    %359 = vmatmul.f32.gmra.mxu0 %v52
    %v360 = vpop.f32.mrf.mxu0
    %v361 = vadd.f32 %v329, %v360
    %362 = vmatmul.f32.gmra.mxu0 %v58
    %v363 = vpop.f32.mrf.mxu0
    %v364 = vadd.f32 %v332, %v363
    %365 = vmatmul.f32.gmra.mxu0 %v64
    %v366 = vpop.f32.mrf.mxu0
    %v367 = vadd.f32 %v335, %v366
    %368 = vmatmul.f32.gmra.mxu0 %v70
    %v369 = vpop.f32.mrf.mxu0
    %v370 = vadd.f32 %v338, %v369
    %371 = vmatmul.f32.gmra.mxu0 %v76
    %v372 = vpop.f32.mrf.mxu0
    %v373 = vadd.f32 %v341, %v372
    %374 = vdwg.mxu0
    %375 = vmatpush.msra.mxu0 %v206
    %376 = vmatpush.msra.mxu0 %v204
    %377 = vmatpush.msra.mxu0 %v202
    %378 = vmatpush.msra.mxu0 %v200
    %379 = vmatpush.msra.mxu0 %v198
    %380 = vmatpush.msra.mxu0 %v196
    %381 = vmatpush.msra.mxu0 %v194
    %382 = vmatpush.msra.mxu0 %v192
    %383 = vmatpush.msra.mxu0 %v190
    %384 = vmatpush.msra.mxu0 %v188
    %385 = vmatpush.msra.mxu0 %v186
    %386 = vmatpush.msra.mxu0 %v184
    %387 = vmatpush.msra.mxu0 %v182
    %388 = vmatpush.msra.mxu0 %v180
    %389 = vmatpush.msra.mxu0 %v178
    %390 = vmatpush.msra.mxu0 %v176
    %391 = vmatmul.f32.gmra.mxu0 %v53
    %v392 = vpop.f32.mrf.mxu0
    %v393 = vadd.f32 %v361, %v392
    %394 = vmatmul.f32.gmra.mxu0 %v59
    %v395 = vpop.f32.mrf.mxu0
    %v396 = vadd.f32 %v364, %v395
    %397 = vmatmul.f32.gmra.mxu0 %v65
    %v398 = vpop.f32.mrf.mxu0
    %v399 = vadd.f32 %v367, %v398
    %400 = vmatmul.f32.gmra.mxu0 %v71
    %v401 = vpop.f32.mrf.mxu0
    %v402 = vadd.f32 %v370, %v401
    %403 = vmatmul.f32.gmra.mxu0 %v77
    %v404 = vpop.f32.mrf.mxu0
    %v405 = vadd.f32 %v373, %v404
    %406 = vdwg.mxu0
    %407 = vmatpush.msra.mxu0 %v238
    %408 = vmatpush.msra.mxu0 %v236
    %409 = vmatpush.msra.mxu0 %v234
    %410 = vmatpush.msra.mxu0 %v232
    %411 = vmatpush.msra.mxu0 %v230
    %412 = vmatpush.msra.mxu0 %v228
    %413 = vmatpush.msra.mxu0 %v226
    %414 = vmatpush.msra.mxu0 %v224
    %415 = vmatpush.msra.mxu0 %v222
    %416 = vmatpush.msra.mxu0 %v220
    %417 = vmatpush.msra.mxu0 %v218
    %418 = vmatpush.msra.mxu0 %v216
    %419 = vmatpush.msra.mxu0 %v214
    %420 = vmatpush.msra.mxu0 %v212
    %421 = vmatpush.msra.mxu0 %v210
    %422 = vmatpush.msra.mxu0 %v208
    %423 = vmatmul.f32.gmra.mxu0 %v54
    %v424 = vpop.f32.mrf.mxu0
    %v425 = vadd.f32 %v393, %v424
    %426 = vmatmul.f32.gmra.mxu0 %v60
    %v427 = vpop.f32.mrf.mxu0
    %v428 = vadd.f32 %v396, %v427
    %429 = vmatmul.f32.gmra.mxu0 %v66
    %v430 = vpop.f32.mrf.mxu0
    %v431 = vadd.f32 %v399, %v430
    %432 = vmatmul.f32.gmra.mxu0 %v72
    %v433 = vpop.f32.mrf.mxu0
    %v434 = vadd.f32 %v402, %v433
    %435 = vmatmul.f32.gmra.mxu0 %v78
    %v436 = vpop.f32.mrf.mxu0
    %v437 = vadd.f32 %v405, %v436
    %438 = vdwg.mxu0
    %439 = vmatpush.msra.mxu0 %v270
    %440 = vmatpush.msra.mxu0 %v268
    %441 = vmatpush.msra.mxu0 %v266
    %442 = vmatpush.msra.mxu0 %v264
    %443 = vmatpush.msra.mxu0 %v262
    %444 = vmatpush.msra.mxu0 %v260
    %445 = vmatpush.msra.mxu0 %v258
    %446 = vmatpush.msra.mxu0 %v256
    %447 = vmatpush.msra.mxu0 %v254
    %448 = vmatpush.msra.mxu0 %v252
    %449 = vmatpush.msra.mxu0 %v250
    %450 = vmatpush.msra.mxu0 %v248
    %451 = vmatpush.msra.mxu0 %v246
    %452 = vmatpush.msra.mxu0 %v244
    %453 = vmatpush.msra.mxu0 %v242
    %454 = vmatpush.msra.mxu0 %v240
    %455 = vmatmul.f32.gmra.mxu0 %v55
    %v456 = vpop.f32.mrf.mxu0
    %v457 = vadd.f32 %v425, %v456
    %458 = vmatmul.f32.gmra.mxu0 %v61
    %v459 = vpop.f32.mrf.mxu0
    %v460 = vadd.f32 %v428, %v459
    %461 = vmatmul.f32.gmra.mxu0 %v67
    %v462 = vpop.f32.mrf.mxu0
    %v463 = vadd.f32 %v431, %v462
    %464 = vmatmul.f32.gmra.mxu0 %v73
    %v465 = vpop.f32.mrf.mxu0
    %v466 = vadd.f32 %v434, %v465
    %467 = vmatmul.f32.gmra.mxu0 %v79
    %v468 = vpop.f32.mrf.mxu0
    %v469 = vadd.f32 %v437, %v468
    %470 = vdwg.mxu0
    %471 = vmatpush.msra.mxu0 %v111
    %472 = vmatpush.msra.mxu0 %v109
    %473 = vmatpush.msra.mxu0 %v107
    %474 = vmatpush.msra.mxu0 %v105
    %475 = vmatpush.msra.mxu0 %v103
    %476 = vmatpush.msra.mxu0 %v101
    %477 = vmatpush.msra.mxu0 %v99
    %478 = vmatpush.msra.mxu0 %v97
    %479 = vmatpush.msra.mxu0 %v95
    %480 = vmatpush.msra.mxu0 %v93
    %481 = vmatpush.msra.mxu0 %v91
    %482 = vmatpush.msra.mxu0 %v89
    %483 = vmatpush.msra.mxu0 %v87
    %484 = vmatpush.msra.mxu0 %v85
    %485 = vmatpush.msra.mxu0 %v83
    %486 = vmatpush.msra.mxu0 %v81
    %487 = vmatmul.f32.gmra.mxu0 %v50
    %v488 = vpop.f32.mrf.mxu0
    %v489 = vadd.f32 %v278, %v488
    %490 = vmatmul.f32.gmra.mxu0 %v56
    %v491 = vpop.f32.mrf.mxu0
    %492 = vmatmul.f32.gmra.mxu0 %v62
    %v493 = vpop.f32.mrf.mxu0
    %v494 = vadd.f32 %v278, %v493
    %495 = vmatmul.f32.gmra.mxu0 %v68
    %v496 = vpop.f32.mrf.mxu0
    %v497 = vadd.f32 %v278, %v496
    %498 = vmatmul.f32.gmra.mxu0 %v74
    %v499 = vpop.f32.mrf.mxu0
    %v500 = vadd.f32 %v278, %v499
    %501 = vdwg.mxu0
    %502 = vmatpush.msra.mxu0 %v143
    %503 = vmatpush.msra.mxu0 %v141
    %504 = vmatpush.msra.mxu0 %v139
    %505 = vmatpush.msra.mxu0 %v137
    %506 = vmatpush.msra.mxu0 %v135
    %507 = vmatpush.msra.mxu0 %v133
    %508 = vmatpush.msra.mxu0 %v131
    %509 = vmatpush.msra.mxu0 %v129
    %510 = vmatpush.msra.mxu0 %v127
    %511 = vmatpush.msra.mxu0 %v125
    %512 = vmatpush.msra.mxu0 %v123
    %513 = vmatpush.msra.mxu0 %v121
    %514 = vmatpush.msra.mxu0 %v119
    %515 = vmatpush.msra.mxu0 %v117
    %516 = vmatpush.msra.mxu0 %v115
    %517 = vmatpush.msra.mxu0 %v113
    %518 = vmatmul.f32.gmra.mxu0 %v51
    %v519 = vpop.f32.mrf.mxu0
    %v520 = vadd.f32 %v489, %v519
    %521 = vmatmul.f32.gmra.mxu0 %v57
    %v522 = vpop.f32.mrf.mxu0
    %523 = vmatmul.f32.gmra.mxu0 %v63
    %v524 = vpop.f32.mrf.mxu0
    %v525 = vadd.f32 %v494, %v524
    %526 = vmatmul.f32.gmra.mxu0 %v69
    %v527 = vpop.f32.mrf.mxu0
    %v528 = vadd.f32 %v497, %v527
    %529 = vmatmul.f32.gmra.mxu0 %v75
    %v530 = vpop.f32.mrf.mxu0
    %v531 = vadd.f32 %v500, %v530
    %532 = vdwg.mxu0
    %533 = vmatpush.msra.mxu0 %v175
    %534 = vmatpush.msra.mxu0 %v173
    %535 = vmatpush.msra.mxu0 %v171
    %536 = vmatpush.msra.mxu0 %v169
    %537 = vmatpush.msra.mxu0 %v167
    %538 = vmatpush.msra.mxu0 %v165
    %539 = vmatpush.msra.mxu0 %v163
    %540 = vmatpush.msra.mxu0 %v161
    %541 = vmatpush.msra.mxu0 %v159
    %542 = vmatpush.msra.mxu0 %v157
    %543 = vmatpush.msra.mxu0 %v155
    %544 = vmatpush.msra.mxu0 %v153
    %545 = vmatpush.msra.mxu0 %v151
    %546 = vmatpush.msra.mxu0 %v149
    %547 = vmatpush.msra.mxu0 %v147
    %548 = vmatpush.msra.mxu0 %v145
    %549 = vmatmul.f32.gmra.mxu0 %v52
    %v550 = vpop.f32.mrf.mxu0
    %v551 = vadd.f32 %v520, %v550
    %552 = vmatmul.f32.gmra.mxu0 %v58
    %v553 = vpop.f32.mrf.mxu0
    %554 = vmatmul.f32.gmra.mxu0 %v64
    %v555 = vpop.f32.mrf.mxu0
    %v556 = vadd.f32 %v525, %v555
    %557 = vmatmul.f32.gmra.mxu0 %v70
    %v558 = vpop.f32.mrf.mxu0
    %v559 = vadd.f32 %v528, %v558
    %560 = vmatmul.f32.gmra.mxu0 %v76
    %v561 = vpop.f32.mrf.mxu0
    %v562 = vadd.f32 %v531, %v561
    %563 = vdwg.mxu0
    %564 = vmatpush.msra.mxu0 %v207
    %565 = vmatpush.msra.mxu0 %v205
    %566 = vmatpush.msra.mxu0 %v203
    %567 = vmatpush.msra.mxu0 %v201
    %568 = vmatpush.msra.mxu0 %v199
    %569 = vmatpush.msra.mxu0 %v197
    %570 = vmatpush.msra.mxu0 %v195
    %571 = vmatpush.msra.mxu0 %v193
    %572 = vmatpush.msra.mxu0 %v191
    %573 = vmatpush.msra.mxu0 %v189
    %574 = vmatpush.msra.mxu0 %v187
    %575 = vmatpush.msra.mxu0 %v185
    %576 = vmatpush.msra.mxu0 %v183
    %577 = vmatpush.msra.mxu0 %v181
    %578 = vmatpush.msra.mxu0 %v179
    %579 = vmatpush.msra.mxu0 %v177
    %580 = vmatmul.f32.gmra.mxu0 %v53
    %v581 = vpop.f32.mrf.mxu0
    %v582 = vadd.f32 %v551, %v581
    %583 = vmatmul.f32.gmra.mxu0 %v59
    %v584 = vpop.f32.mrf.mxu0
    %585 = vmatmul.f32.gmra.mxu0 %v65
    %v586 = vpop.f32.mrf.mxu0
    %v587 = vadd.f32 %v556, %v586
    %588 = vmatmul.f32.gmra.mxu0 %v71
    %v589 = vpop.f32.mrf.mxu0
    %v590 = vadd.f32 %v559, %v589
    %591 = vmatmul.f32.gmra.mxu0 %v77
    %v592 = vpop.f32.mrf.mxu0
    %v593 = vadd.f32 %v562, %v592
    %594 = vdwg.mxu0
    %595 = vmatpush.msra.mxu0 %v239
    %596 = vmatpush.msra.mxu0 %v237
    %597 = vmatpush.msra.mxu0 %v235
    %598 = vmatpush.msra.mxu0 %v233
    %599 = vmatpush.msra.mxu0 %v231
    %600 = vmatpush.msra.mxu0 %v229
    %601 = vmatpush.msra.mxu0 %v227
    %602 = vmatpush.msra.mxu0 %v225
    %603 = vmatpush.msra.mxu0 %v223
    %604 = vmatpush.msra.mxu0 %v221
    %605 = vmatpush.msra.mxu0 %v219
    %606 = vmatpush.msra.mxu0 %v217
    %607 = vmatpush.msra.mxu0 %v215
    %608 = vmatpush.msra.mxu0 %v213
    %609 = vmatpush.msra.mxu0 %v211
    %610 = vmatpush.msra.mxu0 %v209
    %611 = vmatmul.f32.gmra.mxu0 %v54
    %v612 = vpop.f32.mrf.mxu0
    %v613 = vadd.f32 %v582, %v612
    %614 = vmatmul.f32.gmra.mxu0 %v60
    %v615 = vpop.f32.mrf.mxu0
    %616 = vmatmul.f32.gmra.mxu0 %v66
    %v617 = vpop.f32.mrf.mxu0
    %v618 = vadd.f32 %v587, %v617
    %619 = vmatmul.f32.gmra.mxu0 %v72
    %v620 = vpop.f32.mrf.mxu0
    %v621 = vadd.f32 %v590, %v620
    %622 = vmatmul.f32.gmra.mxu0 %v78
    %v623 = vpop.f32.mrf.mxu0
    %v624 = vadd.f32 %v593, %v623
    %625 = vdwg.mxu0
    %626 = vmatpush.msra.mxu0 %v271
    %627 = vmatpush.msra.mxu0 %v269
    %628 = vmatpush.msra.mxu0 %v267
    %629 = vmatpush.msra.mxu0 %v265
    %630 = vmatpush.msra.mxu0 %v263
    %631 = vmatpush.msra.mxu0 %v261
    %632 = vmatpush.msra.mxu0 %v259
    %633 = vmatpush.msra.mxu0 %v257
    %634 = vmatpush.msra.mxu0 %v255
    %635 = vmatpush.msra.mxu0 %v253
    %636 = vmatpush.msra.mxu0 %v251
    %637 = vmatpush.msra.mxu0 %v249
    %638 = vmatpush.msra.mxu0 %v247
    %639 = vmatpush.msra.mxu0 %v245
    %640 = vmatpush.msra.mxu0 %v243
    %641 = vmatpush.msra.mxu0 %v241
    %642 = vmatmul.f32.gmra.mxu0 %v55
    %v643 = vpop.f32.mrf.mxu0
    %v644 = vadd.f32 %v613, %v643
    %645 = vmatmul.f32.gmra.mxu0 %v61
    %v646 = vpop.f32.mrf.mxu0
    %647 = vmatmul.f32.gmra.mxu0 %v67
    %v648 = vpop.f32.mrf.mxu0
    %v649 = vadd.f32 %v618, %v648
    %650 = vmatmul.f32.gmra.mxu0 %v73
    %v651 = vpop.f32.mrf.mxu0
    %v652 = vadd.f32 %v621, %v651
    %653 = vmatmul.f32.gmra.mxu0 %v79
    %v654 = vpop.f32.mrf.mxu0
    %v655 = vadd.f32 %v624, %v654
    %656 = vdwg.mxu0
    %v657 = vmul.f32 %v457, %v457
    %v658 = vmul.f32 %v460, %v460
    %v659 = vmul.f32 %v463, %v463
    %v660 = vmul.f32 %v466, %v466
    %v661 = vmul.f32 %v469, %v469
    %662 = vadd.xlane.f32.xlu0 %v657
    %v663 = vpop.xlane.xlu0 %662
    %664 = vadd.xlane.f32.xlu0 %v658
    %v665 = vpop.xlane.xlu0 %664
    %666 = vadd.xlane.f32.xlu0 %v659
    %v667 = vpop.xlane.xlu0 %666
    %668 = vadd.xlane.f32.xlu0 %v660
    %v669 = vpop.xlane.xlu0 %668
    %670 = vadd.xlane.f32.xlu0 %v661
    %v671 = vpop.xlane.xlu0 %670
    %v672 = vmul.f32 %v457, %v460
    %v673 = vmul.f32 %v457, %v463
    %v674 = vmul.f32 %v457, %v466
    %v675 = vmul.f32 %v457, %v469
    %676 = vadd.xlane.f32.xlu0 %v672
    %v677 = vpop.xlane.xlu0 %676
    %678 = vadd.xlane.f32.xlu0 %v673
    %v679 = vpop.xlane.xlu0 %678
    %680 = vadd.xlane.f32.xlu0 %v674
    %v681 = vpop.xlane.xlu0 %680
    %682 = vadd.xlane.f32.xlu0 %v675
    %v683 = vpop.xlane.xlu0 %682
    %v684 = vrsqrt.pop %v663
    %v685 = vmul.f32 %v684, %v663
    %v686 = vmul.f32 %v685, %v684
    %v687 = vmul.f32 0.5, %v686
    %v688 = vsub.f32 1.5, %v687
    %v689 = vmul.f32 %v684, %v688
    %v690 = vmul.f32 %v663, %v689
    %vm691 = vcmp.eq.f32.partialorder %v663, inf
    %v692 = vsel %vm691, %v663, %v690
    %vm693 = vcmp.eq.f32.partialorder %v663, 0.0
    %v694 = vand.u32 %v663, 2147483648
    %v695 = vsel %vm693, %v694, %v692
    %v696 = vrsqrt.pop %v665
    %v697 = vmul.f32 %v696, %v665
    %v698 = vmul.f32 %v697, %v696
    %v699 = vmul.f32 0.5, %v698
    %v700 = vsub.f32 1.5, %v699
    %v701 = vmul.f32 %v696, %v700
    %v702 = vmul.f32 %v665, %v701
    %vm703 = vcmp.eq.f32.partialorder %v665, inf
    %v704 = vsel %vm703, %v665, %v702
    %vm705 = vcmp.eq.f32.partialorder %v665, 0.0
    %v706 = vand.u32 %v665, 2147483648
    %v707 = vsel %vm705, %v706, %v704
    %v708 = vrsqrt.pop %v667
    %v709 = vmul.f32 %v708, %v667
    %v710 = vmul.f32 %v709, %v708
    %v711 = vmul.f32 0.5, %v710
    %v712 = vsub.f32 1.5, %v711
    %v713 = vmul.f32 %v708, %v712
    %v714 = vmul.f32 %v667, %v713
    %vm715 = vcmp.eq.f32.partialorder %v667, inf
    %v716 = vsel %vm715, %v667, %v714
    %vm717 = vcmp.eq.f32.partialorder %v667, 0.0
    %v718 = vand.u32 %v667, 2147483648
    %v719 = vsel %vm717, %v718, %v716
    %v720 = vrsqrt.pop %v669
    %v721 = vmul.f32 %v720, %v669
    %v722 = vmul.f32 %v721, %v720
    %v723 = vmul.f32 0.5, %v722
    %v724 = vsub.f32 1.5, %v723
    %v725 = vmul.f32 %v720, %v724
    %v726 = vmul.f32 %v669, %v725
    %vm727 = vcmp.eq.f32.partialorder %v669, inf
    %v728 = vsel %vm727, %v669, %v726
    %vm729 = vcmp.eq.f32.partialorder %v669, 0.0
    %v730 = vand.u32 %v669, 2147483648
    %v731 = vsel %vm729, %v730, %v728
    %v732 = vrsqrt.pop %v671
    %v733 = vmul.f32 %v732, %v671
    %v734 = vmul.f32 %v733, %v732
    %v735 = vmul.f32 0.5, %v734
    %v736 = vsub.f32 1.5, %v735
    %v737 = vmul.f32 %v732, %v736
    %v738 = vmul.f32 %v671, %v737
    %vm739 = vcmp.eq.f32.partialorder %v671, inf
    %v740 = vsel %vm739, %v671, %v738
    %vm741 = vcmp.eq.f32.partialorder %v671, 0.0
    %v742 = vand.u32 %v671, 2147483648
    %v743 = vsel %vm741, %v742, %v740
    %v744 = vmul.f32 %v695, %v707
    %v745 = vmax.f32 %v744, 1e-08
    %v746 = vrcp.pop %v745
    %v747 = vmul.f32 %v745, %v746
    %v748 = vsub.f32 1.0, %v747
    %v749 = vmul.f32 %v746, %v748
    %v750 = vadd.f32 %v746, %v749
    %vm751 = vweird.f32 %v745
    %vm752 = vweird.f32 %v746
    %vm753 = vmor %vm751, %vm752
    %v754 = vsel %vm753, %v746, %v750
    %v755 = vand.u32 2147483647, %v745
    %vm756 = vcmp.eq.f32.partialorder %v755, 8.507059e+37
    %v757 = vand.u32 %v745, 2147483648
    %v758 = vor.u32 1.1754944e-38, %v757
    %v759 = vsel %vm756, %v758, %v754
    %v760 = vmul.f32 %v677, %v759
    %v761 = vrot.slane %v760, 4
    %v762 = vadd.f32 %v760, %v761
    %v763 = vrot.slane %v762, 2
    %v764 = vadd.f32 %v762, %v763
    %v765 = vrot.slane %v764, 1
    %v766 = vadd.f32 %v764, %v765
    %v767 = vrcp.pop 8.0
    %v768 = vmul.f32 8.0, %v767
    %v769 = vsub.f32 1.0, %v768
    %v770 = vmul.f32 %v767, %v769
    %v771 = vadd.f32 %v767, %v770
    %vm772 = vweird.f32 %v767
    %v773 = vsel %vm772, %v767, %v771
    %v774 = vmul.f32 %v766, %v773
    %v775 = vld [vmem:[%s3] sm:$0xff]
    %v776 = vmul.f32 %v695, %v719
    %v777 = vmax.f32 %v776, 1e-08
    %v778 = vrcp.pop %v777
    %v779 = vmul.f32 %v777, %v778
    %v780 = vsub.f32 1.0, %v779
    %v781 = vmul.f32 %v778, %v780
    %v782 = vadd.f32 %v778, %v781
    %vm783 = vweird.f32 %v777
    %vm784 = vweird.f32 %v778
    %vm785 = vmor %vm783, %vm784
    %v786 = vsel %vm785, %v778, %v782
    %v787 = vand.u32 2147483647, %v777
    %vm788 = vcmp.eq.f32.partialorder %v787, 8.507059e+37
    %v789 = vand.u32 %v777, 2147483648
    %v790 = vor.u32 1.1754944e-38, %v789
    %v791 = vsel %vm788, %v790, %v786
    %v792 = vmul.f32 %v679, %v791
    %v793 = vmul.f32 %v792, %v775
    %v794 = vmul.f32 %v695, %v731
    %v795 = vmax.f32 %v794, 1e-08
    %v796 = vrcp.pop %v795
    %v797 = vmul.f32 %v795, %v796
    %v798 = vsub.f32 1.0, %v797
    %v799 = vmul.f32 %v796, %v798
    %v800 = vadd.f32 %v796, %v799
    %vm801 = vweird.f32 %v795
    %vm802 = vweird.f32 %v796
    %vm803 = vmor %vm801, %vm802
    %v804 = vsel %vm803, %v796, %v800
    %v805 = vand.u32 2147483647, %v795
    %vm806 = vcmp.eq.f32.partialorder %v805, 8.507059e+37
    %v807 = vand.u32 %v795, 2147483648
    %v808 = vor.u32 1.1754944e-38, %v807
    %v809 = vsel %vm806, %v808, %v804
    %v810 = vmul.f32 %v681, %v809
    %v811 = vmul.f32 %v810, %v775
    %v812 = vmul.f32 %v695, %v743
    %v813 = vmax.f32 %v812, 1e-08
    %v814 = vrcp.pop %v813
    %v815 = vmul.f32 %v813, %v814
    %v816 = vsub.f32 1.0, %v815
    %v817 = vmul.f32 %v814, %v816
    %v818 = vadd.f32 %v814, %v817
    %vm819 = vweird.f32 %v813
    %vm820 = vweird.f32 %v814
    %vm821 = vmor %vm819, %vm820
    %v822 = vsel %vm821, %v814, %v818
    %v823 = vand.u32 2147483647, %v813
    %vm824 = vcmp.eq.f32.partialorder %v823, 8.507059e+37
    %v825 = vand.u32 %v813, 2147483648
    %v826 = vor.u32 1.1754944e-38, %v825
    %v827 = vsel %vm824, %v826, %v822
    %v828 = vmul.f32 %v683, %v827
    %v829 = vmul.f32 %v828, %v775
    %831 = vrot.lane.b32.xlu0 %v652, 125
    %v832 = vpop.permute.xlu0 %831
    %v834 = vadd.f32 %v649, %v832
    %836 = vrot.lane.b32.xlu0 %v655, 122
    %v837 = vpop.permute.xlu0 %836
    %v839 = vadd.f32 %v834, %v837
    %v840 = vperm.slane %v49, 1
    %842 = vrot.lane.b32.xlu0 %v840, 3
    %v843 = vpop.permute.xlu0 %842
    %v845 = vadd.f32 %v839, %v843
    %vm846 = vcmask 48152
    %v847 = vsel %vm846, %v845, -inf
    %848 = vmax.xlane.f32.xlu0 %v847
    %v849 = vpop.xlane.xlu0 %848
    %v850 = vsub.f32 %v845, %v849
    %v851 = vmul.f32 %v850, 1.442695
    %v852 = vpow.pop %v851
    %854 = vrot.lane.b32.xlu0 %v852, 125
    %v855 = vpop.permute.xlu0 %854
    %vm857 = vcmask 23552
    %v858 = vsel %vm857, %v855, 0.0
    %859 = vadd.xlane.f32.xlu0 %v858
    %v860 = vpop.xlane.xlu0 %859
    %v861 = vrcp.pop %v860
    %v862 = vmul.f32 %v860, %v861
    %v863 = vsub.f32 1.0, %v862
    %v864 = vmul.f32 %v861, %v863
    %v865 = vadd.f32 %v861, %v864
    %vm866 = vweird.f32 %v860
    %vm867 = vweird.f32 %v861
    %vm868 = vmor %vm866, %vm867
    %v869 = vsel %vm868, %v861, %v865
    %v870 = vand.u32 2147483647, %v860
    %vm871 = vcmp.eq.f32.partialorder %v870, 8.507059e+37
    %v872 = vand.u32 %v860, 2147483648
    %v873 = vor.u32 1.1754944e-38, %v872
    %v874 = vsel %vm871, %v873, %v869
    %v875 = vmul.f32 %v852, %v874
    %877 = vrot.lane.b32.xlu0 %v793, 3
    %v878 = vpop.permute.xlu0 %877
    %v880 = vmul.f32 %v875, %v878
    %882 = vrot.lane.b32.xlu0 %v811, 3
    %v883 = vpop.permute.xlu0 %882
    %v885 = vmul.f32 %v875, %v883
    %887 = vrot.lane.b32.xlu0 %v885, 127
    %v888 = vpop.permute.xlu0 %887
    %v890 = vadd.f32 %v880, %v888
    %892 = vrot.lane.b32.xlu0 %v829, 3
    %v893 = vpop.permute.xlu0 %892
    %v895 = vmul.f32 %v875, %v893
    %897 = vrot.lane.b32.xlu0 %v895, 126
    %v898 = vpop.permute.xlu0 %897
    %v900 = vadd.f32 %v890, %v898
    %vm901 = vcmask 31768
    %v902 = vsel %vm901, %v900, 0.0
    %v903 = vrot.slane %v902, 4
    %v904 = vadd.f32 %v902, %v903
    %v905 = vrot.slane %v904, 2
    %v906 = vadd.f32 %v904, %v905
    %v907 = vrot.slane %v906, 1
    %v908 = vadd.f32 %v906, %v907
    %v909 = vmul.f32 %v908, %v773
    %v910 = vsub.f32 1.0, %v774
    %v911 = vadd.f32 %v910, %v909
    %v912 = vmax.f32 %v911, 0.0
    %v913 = vlaneseq
    %v914 = vshrl.u32 %v913, 7
    %v915 = vlaneseq
    %v916 = vand.u32 %v915, 127
    %vm917 = vcmp.eq.s32.totalorder %v914, 0
    %vm918 = vcmp.eq.s32.totalorder %v916, 127
    %vm919 = vmand %vm917, %vm918
    %921 = vset.pattern.permute.xlu0 3
    %922 = vperm.xlu0 %921, %v912
    %v923 = vpop.permute.xlu0 %922
    %v925 = vsel %vm919, %v923, %v644
    %926 = vst [vmem:[%s4] sm:$0xff] %v925
    // Predicated region
    $region26: #{debias_forward.1} parent=1 // pred_check
      _
    $region27: #{debias_forward.1} parent=1 // pred_check_branch
      %928 = sbr.rel (0) target = $region29
    $region28: #{debias_forward.1} parent=1 // pred_region
      _
    $region29: #{debias_forward.1} parent=1 // pred_fallthru
      _
    // Predicated region
    $region30: #{debias_forward.1} parent=1 // pred_check
      _
    $region31: #{debias_forward.1} parent=1 // pred_check_branch
      %930 = sbr.rel (0) target = $region33
    $region32: #{debias_forward.1} parent=1 // pred_region
      _
    $region33: #{debias_forward.1} parent=1 // pred_fallthru
      _
    %931 = vsyncpa [#allocation3], 1
    %932 = vsyncpa [#allocation5], 1

</llo_original>
